<compile_context>
chip_gen: v5e
topology: v5e:2x2
jax: 0.10.0
libtpu: 0.0.40
codegen_flags: <defaults>
</compile_context>

<pallas_src>
import functools

import jax
import jax.numpy as jnp
from jax.experimental import pallas as pl
from jax.experimental.pallas import tpu as pltpu


def moe_gate_kernel(feats_ref, wgate_ref, gates_ref, acc_ref, *,
                    K, hw, tile_hw, inv_hw):
    """One (batch_block, hw_tile) grid step.

    feats_ref : (bb, C, tile_hw)  input tile (f32 or bf16)
    wgate_ref : (C, M)            float32 gate weights
    gates_ref : (1, bb, M)        float32 output gates for this batch block
    acc_ref   : (bb, C, 128)      float32 lane-resident partial-sum scratch
    """
    h = pl.program_id(1)
    bb, C, _ = feats_ref.shape
    M = wgate_ref.shape[1]
    ragged = (hw % tile_hw) != 0  # last HW tile extends past HW -> mask needed

    @pl.when(h == 0)
    def _init():
        acc_ref[...] = jnp.zeros_like(acc_ref)

    if ragged:
        lane = jax.lax.broadcasted_iota(jnp.int32, (bb, C, 128), 2)
        base = h * tile_hw

    # ---- lane-resident partial reduction of this HW tile (VPU adds only) ----
    acc = acc_ref[...]
    for j in range(tile_hw // 128):
        chunk = feats_ref[:, :, j * 128:(j + 1) * 128].astype(jnp.float32)
        if ragged:
            # Zero out-of-range lanes of the (unspecified) padded tail in-kernel
            # instead of padding the tensor in HBM.
            chunk = jnp.where(base + (j * 128) + lane < hw, chunk, 0.0)
        acc = acc + chunk
    acc_ref[...] = acc

    # ---- finalize: one cross-lane reduce, matmul, top-k, softmax, scatter ----
    @pl.when(h == pl.num_programs(1) - 1)
    def _finalize():
        feats_S = jnp.sum(acc_ref[...], axis=-1) * inv_hw                # (bb, C)
        logits = jnp.dot(feats_S, wgate_ref[...],
                         preferred_element_type=jnp.float32)             # (bb, M)

        NEG = jnp.float32(-1e30)
        iota = jax.lax.broadcasted_iota(jnp.int32, (bb, M), 1)
        masked = logits
        top_vals, onehots = [], []
        for _ in range(K):   # iterative top-k; ties -> lowest index (torch.topk)
            mx = jnp.max(masked, axis=1, keepdims=True)                  # (bb, 1)
            eq = masked >= mx
            idx = jnp.min(jnp.where(eq, iota, M), axis=1, keepdims=True)
            oh = iota == idx                                             # (bb, M)
            top_vals.append(mx)
            onehots.append(oh)
            masked = jnp.where(oh, NEG, masked)

        if K == 1:
            # softmax over a single selected logit is exactly 1.0
            gates = onehots[0].astype(jnp.float32)
        else:
            # softmax over the K selected (bb, 1) logits; exact division
            # (runs once per batch block -> accuracy is free).
            m = top_vals[0]                      # selected in descending order
            es = [jnp.exp(v - m) for v in top_vals]
            denom = es[0]
            for e in es[1:]:
                denom = denom + e
            inv = 1.0 / denom
            gates = jnp.zeros((bb, M), jnp.float32)
            for i in range(K):
                gates = gates + jnp.where(onehots[i], es[i] * inv, 0.0)

        gates_ref[...] = gates[None, :, :]


def _cv_squared(x):
    # matches torch cv_squared: returns 0 for a length-1 vector; unbiased var.
    if x.shape[0] == 1:
        return jnp.float32(0.0)
    x = x.astype(jnp.float32)
    return jnp.var(x, ddof=1) / (jnp.mean(x) ** 2 + 1e-10)


def _tpu_hw_probe():
    """Best-effort (TensorCores per chip, per-core VMEM bytes).

    Capability probe with conservative fallbacks only -- kernel lowering or
    compile errors are never swallowed here.
    """
    vmem_cap = None
    try:
        vmem_cap = int(pltpu.get_tpu_info().vmem_capacity_bytes)
    except Exception:                                   # noqa: BLE001 (probe only)
        vmem_cap = None
    kind = ""
    try:
        kind = jax.devices()[0].device_kind.lower()
    except Exception:                                   # noqa: BLE001 (probe only)
        kind = ""
    two_tc = any(tag in kind for tag in ("v7", "v4", "v5p"))
    if vmem_cap is None:
        vmem_cap = (64 << 20) if "v7" in kind else (128 << 20)
    return (2 if two_tc else 1), vmem_cap


def moe_gate_forward(feats_nchw, w_gate, *, K=1, loss_coef=0.01, max_tile_hw=None):
    """Eval-mode MoEGate forward.

    feats_nchw: (B, C, H, W) float array (f32 or bf16; streamed as-is).
    w_gate:     (C, M) gate weights.
    max_tile_hw: optional cap on the HW tile (testing / tuning hook).
    Returns (gates (B, M) float32, loss scalar float32).
    """
    B, C, H, W = feats_nchw.shape
    M = w_gate.shape[1]
    assert 1 <= K <= M
    HW = H * W
    itemsize = int(jnp.dtype(feats_nchw.dtype).itemsize)

    num_tc, vmem_cap = _tpu_hw_probe()

    # One batch block per TensorCore: 1 on v5e/v6e, 2 on v7x/v4/v5p so the
    # "parallel" batch axis actually shards across cores.
    nb = num_tc if B >= num_tc else 1
    bb = pl.cdiv(B, nb)

    # ---- generation-aware VMEM budget and lane-aligned tile sizing ---------
    budget = int(0.65 * vmem_cap)   # ~41 MiB on v7x (64 MiB VMEM), ~83 MiB on v5e/v6e
    n_buf = 2                       # default double buffering; compute is tiny, so
                                    # spend VMEM on tile size, not buffer depth
    hw_lanes = pl.cdiv(HW, 128) * 128
    MAX_TILE_HW = 4096              # bounds the unrolled add chain / compile time

    def _fixed_bytes(bb_):
        return (2 * C * M * 4           # w_gate (double-buffered)
                + 2 * bb_ * M * 4       # gates output buffers
                + bb_ * C * 128 * 4     # lane-resident f32 accumulator scratch
                + (2 << 20))            # internal-scratch headroom

    def _best_tile_hw(bb_):
        avail = budget - _fixed_bytes(bb_)
        t = (avail // (n_buf * bb_ * C * itemsize)) // 128 * 128
        return int(min(max(t, 0), hw_lanes, MAX_TILE_HW))

    tile_hw = _best_tile_hw(bb)
    # Large C*bb: shrink the batch block until at least a 128-lane tile fits.
    while tile_hw < 128 and bb > 1:
        bb = pl.cdiv(bb, 2)
        nb = pl.cdiv(B, bb)
        tile_hw = _best_tile_hw(bb)
    if tile_hw < 128:
        # TODO(synk): C-tiling fallback for extreme channel counts.
        tile_hw = 128
    if max_tile_hw is not None:
        tile_hw = min(tile_hw, max(128, (int(max_tile_hw) // 128) * 128))

    n_hw_tiles = pl.cdiv(HW, tile_hw)

    vmem_need = n_buf * bb * C * tile_hw * itemsize + _fixed_bytes(bb)
    # Never clamp the limit below the actual need; never above physical VMEM.
    vmem_limit = int(min(max(vmem_need + (2 << 20), 16 << 20), vmem_cap))

    feats3 = feats_nchw.reshape(B, C, HW)   # metadata reshape: no pad, no cast
    wgate_f32 = w_gate.astype(jnp.float32)

    kernel = functools.partial(moe_gate_kernel, K=K, hw=HW, tile_hw=tile_hw,
                               inv_hw=1.0 / HW)

    gates_blocks = pl.pallas_call(
        kernel,
        out_shape=jax.ShapeDtypeStruct((nb, bb, M), jnp.float32),
        grid_spec=pltpu.PrefetchScalarGridSpec(
            num_scalar_prefetch=0,
            grid=(nb, n_hw_tiles),
            in_specs=[
                pl.BlockSpec((bb, C, tile_hw), lambda b, h: (b, 0, h)),
                pl.BlockSpec((C, M), lambda b, h: (0, 0)),
            ],
            out_specs=pl.BlockSpec((1, bb, M), lambda b, h: (b, 0, 0)),
            scratch_shapes=[pltpu.VMEM((bb, C, 128), jnp.float32)],
        ),
        compiler_params=pltpu.CompilerParams(
            dimension_semantics=("parallel", "arbitrary"),
            vmem_limit_bytes=vmem_limit,
        ),
    )(feats3, wgate_f32)

    gates = gates_blocks.reshape(nb * bb, M)[:B]      # drop padded batch rows

    # Load-balancing loss (O(B*M); plain JAX so the batch grid axis stays
    # core-parallel). Matches the torch eval path exactly.
    importance = gates.sum(axis=0)
    load = (gates > 0).sum(axis=0).astype(jnp.float32)
    loss = (_cv_squared(importance) + _cv_squared(load)) * loss_coef
    return gates, loss


def _reference(feats_nchw, w_gate, K=1, loss_coef=0.01):
    B, C, H, W = feats_nchw.shape
    feats_S = feats_nchw.astype(jnp.float32).reshape(B, C, -1).mean(-1)
    logits = feats_S @ w_gate.astype(jnp.float32)
    top_idx = jnp.argsort(-logits, axis=1)[:, :K]
    top_val = jnp.take_along_axis(logits, top_idx, axis=1)
    top_gates = jax.nn.softmax(top_val, axis=1)
    gates = jnp.zeros_like(logits)
    gates = gates.at[jnp.arange(B)[:, None], top_idx].set(top_gates)
    importance = gates.sum(0)
    load = (gates > 0).sum(0).astype(jnp.float32)
    cv = lambda x: jnp.var(x, ddof=1) / (jnp.mean(x) ** 2 + 1e-10)
    loss = (cv(importance) + cv(load)) * loss_coef
    return gates, loss


if __name__ == "__main__":
    key = jax.random.PRNGKey(0)
    k1, k2, k3 = jax.random.split(key, 3)

    B, C, H, W, M = 2, 4, 16, 16, 4
    feats = jax.random.normal(k1, (B, C, H, W), dtype=jnp.float32)
    # Module __init__ zero-inits w_gate; use a small deterministic random init
    # instead so the gating path is non-degenerate (same (d, M) shape).
    w_gate = 0.1 * jax.random.normal(k2, (C, M), dtype=jnp.float32)

    # 1) K = 1 (module default); tile cap so the HW reduction spans 2 grid steps.
    gates, loss = moe_gate_forward(feats, w_gate, K=1, loss_coef=0.01,
                                   max_tile_hw=128)
    jax.block_until_ready((gates, loss))
    g_ref, l_ref = _reference(feats, w_gate, K=1, loss_coef=0.01)
    assert jnp.allclose(gates, g_ref, atol=1e-5), (gates, g_ref)
    assert jnp.allclose(loss, l_ref, atol=1e-5), (loss, l_ref)

    # 2) Non-128-multiple spatial size, small tiles: in-kernel ragged-lane
    #    masking across 3 HW tiles (no wrapper padding copy).
    feats_b = jax.random.normal(k3, (B, C, 16, 20), dtype=jnp.float32)
    gates_b, loss_b = moe_gate_forward(feats_b, w_gate, K=1, loss_coef=0.01,
                                       max_tile_hw=128)
    jax.block_until_ready((gates_b, loss_b))
    g_ref_b, l_ref_b = _reference(feats_b, w_gate, K=1, loss_coef=0.01)
    assert jnp.allclose(gates_b, g_ref_b, atol=1e-5), (gates_b, g_ref_b)
    assert jnp.allclose(loss_b, l_ref_b, atol=1e-5), (loss_b, l_ref_b)

    # 3) Same ragged spatial size with auto tile sizing (single padded tile).
    gates_c, loss_c = moe_gate_forward(feats_b, w_gate, K=1, loss_coef=0.01)
    jax.block_until_ready((gates_c, loss_c))
    assert jnp.allclose(gates_c, g_ref_b, atol=1e-5), (gates_c, g_ref_b)
    assert jnp.allclose(loss_c, l_ref_b, atol=1e-5), (loss_c, l_ref_b)

    # 4) K = 2: multi-expert softmax path (exact division -> tight tolerance).
    gates2, loss2 = moe_gate_forward(feats, w_gate, K=2, loss_coef=0.01)
    jax.block_until_ready((gates2, loss2))
    g_ref2, l_ref2 = _reference(feats, w_gate, K=2, loss_coef=0.01)
    assert jnp.allclose(gates2, g_ref2, atol=1e-5), (gates2, g_ref2)
    assert jnp.allclose(loss2, l_ref2, atol=1e-5), (loss2, l_ref2)

    # 5) bf16 feats streamed as bf16 with f32 accumulation in the kernel.
    feats_bf16 = feats.astype(jnp.bfloat16)
    gates3, loss3 = moe_gate_forward(feats_bf16, w_gate, K=1, loss_coef=0.01)
    jax.block_until_ready((gates3, loss3))
    g_ref3, l_ref3 = _reference(feats_bf16, w_gate, K=1, loss_coef=0.01)
    assert jnp.allclose(gates3, g_ref3, atol=1e-5), (gates3, g_ref3)
    assert jnp.allclose(loss3, l_ref3, atol=1e-5), (loss3, l_ref3)

    print("KERNEL_OK")
</pallas_src>

<mosaic_0001>
module attributes {stable_mosaic.version = 11 : i64} {
  func.func @moe_gate_kernel(%arg0: i32, %arg1: i32, %arg2: memref<2x4x128xf32, #tpu.memory_space<vmem>>, %arg3: memref<4x4xf32, #tpu.memory_space<vmem>>, %arg4: memref<1x2x4xf32, #tpu.memory_space<vmem>>, %arg5: memref<2x4x128xf32, #tpu.memory_space<vmem>>) attributes {dimension_semantics = [#tpu.dimension_semantics<parallel>, #tpu.dimension_semantics<arbitrary>], iteration_bounds = array<i64: 1, 2>, scalar_prefetch = 0 : i64, scratch_operands = 1 : i64, tpu.core_type = #tpu.core_type<tc>, window_params = [{transform_indices = @transform_0, window_bounds = array<i64: 2, 4, 128>}, {pipeline_mode = #tpu.pipeline_mode<synchronous>, transform_indices = @transform_1, window_bounds = array<i64: 4, 4>}, {transform_indices = @transform_2, window_bounds = array<i64: 1, 2, 4>}]} {
    %c0_i32 = arith.constant 0 : i32
    %0 = arith.cmpi eq, %arg1, %c0_i32 : i32
    %1 = arith.extui %0 : i1 to i32
    %c0_i32_0 = arith.constant 0 : i32
    %2 = arith.cmpi ne, %1, %c0_i32_0 : i32
    scf.if %2 {
      %cst = arith.constant 0.000000e+00 : f32
      %10 = vector.broadcast %cst : f32 to vector<2x4x128xf32>
      %c0_10 = arith.constant 0 : index
      %c0_11 = arith.constant 0 : index
      %c0_12 = arith.constant 0 : index
      %11 = vector.load %arg5[%c0_10, %c0_11, %c0_12] : memref<2x4x128xf32, #tpu.memory_space<vmem>>, vector<2x4x128xf32>
      tpu.vector_store %arg5[%c0_10, %c0_11, %c0_12], %10 {strides = array<i32>} : memref<2x4x128xf32, #tpu.memory_space<vmem>>, vector<2x4x128xf32>,
    } else {
    }
    %c0 = arith.constant 0 : index
    %c0_1 = arith.constant 0 : index
    %c0_2 = arith.constant 0 : index
    %3 = vector.load %arg5[%c0, %c0_1, %c0_2] : memref<2x4x128xf32, #tpu.memory_space<vmem>>, vector<2x4x128xf32>
    %c0_3 = arith.constant 0 : index
    %c0_4 = arith.constant 0 : index
    %c0_5 = arith.constant 0 : index
    %4 = vector.load %arg2[%c0_3, %c0_4, %c0_5] : memref<2x4x128xf32, #tpu.memory_space<vmem>>, vector<2x4x128xf32>
    %5 = arith.addf %3, %4 : vector<2x4x128xf32>
    %c0_6 = arith.constant 0 : index
    %c0_7 = arith.constant 0 : index
    %c0_8 = arith.constant 0 : index
    %6 = vector.load %arg5[%c0_6, %c0_7, %c0_8] : memref<2x4x128xf32, #tpu.memory_space<vmem>>, vector<2x4x128xf32>
    tpu.vector_store %arg5[%c0_6, %c0_7, %c0_8], %5 {strides = array<i32>} : memref<2x4x128xf32, #tpu.memory_space<vmem>>, vector<2x4x128xf32>,
    %c1_i32 = arith.constant 1 : i32
    %7 = arith.cmpi eq, %arg1, %c1_i32 : i32
    %8 = arith.extui %7 : i1 to i32
    %c0_i32_9 = arith.constant 0 : i32
    %9 = arith.cmpi ne, %8, %c0_i32_9 : i32
    scf.if %9 {
      %c0_10 = arith.constant 0 : index
      %c0_11 = arith.constant 0 : index
      %c0_12 = arith.constant 0 : index
      %10 = vector.load %arg5[%c0_10, %c0_11, %c0_12] : memref<2x4x128xf32, #tpu.memory_space<vmem>>, vector<2x4x128xf32>
      %cst = arith.constant dense<0.000000e+00> : vector<2x4xf32>
      %11 = vector.multi_reduction <add>, %10, %cst [2] : vector<2x4x128xf32> to vector<2x4xf32>
      %cst_13 = arith.constant 3.906250e-03 : f32
      %12 = vector.broadcast %cst_13 : f32 to vector<2x4xf32>
      %13 = arith.mulf %11, %12 : vector<2x4xf32>
      %c0_14 = arith.constant 0 : index
      %c0_15 = arith.constant 0 : index
      %14 = vector.load %arg3[%c0_14, %c0_15] : memref<4x4xf32, #tpu.memory_space<vmem>>, vector<4x4xf32>
      %cst_16 = arith.constant dense<0.000000e+00> : vector<2x4xf32>
      %15 = tpu.matmul %13, %14, %cst_16 {dimension_numbers = #tpu.dot_dimension_numbers<[1], [0], [0], [1], [0, 0, 1, 1], [], []>} : vector<2x4xf32>, vector<4x4xf32>, vector<2x4xf32> -> vector<2x4xf32>
      %16 = tpu.iota {dimensions = array<i32: 1>} : vector<2x4xi32>
      %cst_17 = arith.constant dense<0xFF800000> : vector<2xf32>
      %17 = vector.multi_reduction <maximumf>, %15, %cst_17 [1] : vector<2x4xf32> to vector<2xf32>
      %18 = vector.shape_cast %17 : vector<2xf32> to vector<2x1xf32>
      %19 = vector.broadcast %18 : vector<2x1xf32> to vector<2x4xf32>
      %20 = arith.cmpf oge, %15, %19 : vector<2x4xf32>
      %c4_i32 = arith.constant 4 : i32
      %21 = vector.broadcast %c4_i32 : i32 to vector<2x4xi32>
      %22 = arith.select %20, %16, %21 : vector<2x4xi1>, vector<2x4xi32>
      %cst_18 = arith.constant dense<2147483647> : vector<2xi32>
      %23 = vector.multi_reduction <minsi>, %22, %cst_18 [1] : vector<2x4xi32> to vector<2xi32>
      %24 = vector.shape_cast %23 : vector<2xi32> to vector<2x1xi32>
      %25 = vector.broadcast %24 : vector<2x1xi32> to vector<2x4xi32>
      %26 = arith.cmpi eq, %16, %25 : vector<2x4xi32>
      %27 = arith.extui %26 : vector<2x4xi1> to vector<2x4xi32>
      %28 = arith.sitofp %27 : vector<2x4xi32> to vector<2x4xf32>
      %29 = vector.shape_cast %28 : vector<2x4xf32> to vector<1x2x4xf32>
      %c0_19 = arith.constant 0 : index
      %c0_20 = arith.constant 0 : index
      %c0_21 = arith.constant 0 : index
      %30 = vector.load %arg4[%c0_19, %c0_20, %c0_21] : memref<1x2x4xf32, #tpu.memory_space<vmem>>, vector<1x2x4xf32>
      tpu.vector_store %arg4[%c0_19, %c0_20, %c0_21], %29 {strides = array<i32>} : memref<1x2x4xf32, #tpu.memory_space<vmem>>, vector<1x2x4xf32>,
    } else {
    }
    return
  }
  func.func @transform_0(%arg0: i32, %arg1: i32) -> (i32, i32, i32) {
    %c0_i32 = arith.constant 0 : i32
    %c0_i32_0 = arith.constant 0 : i32
    return %arg0, %c0_i32, %arg1 : i32, i32, i32
  }
  func.func @transform_1(%arg0: i32, %arg1: i32) -> (i32, i32) {
    %c0_i32 = arith.constant 0 : i32
    %c0_i32_0 = arith.constant 0 : i32
    %c0_i32_1 = arith.constant 0 : i32
    return %c0_i32, %c0_i32_0 : i32, i32
  }
  func.func @transform_2(%arg0: i32, %arg1: i32) -> (i32, i32, i32) {
    %c0_i32 = arith.constant 0 : i32
    %c0_i32_0 = arith.constant 0 : i32
    %c0_i32_1 = arith.constant 0 : i32
    return %arg0, %c0_i32, %c0_i32_0 : i32, i32, i32
  }
}

</mosaic_0001>

<llo_original>
// kernel: tpu_custom_call.1
$region0: #{tpu_custom_call.1}
  #allocation0 [shape = 'u32[]', space=smem, size = 0x4, offset = 0x4, fixed_abs, tag = 'smem constant byte address 0x4 - core index']
  #allocation1 [shape = 'u32[72,128]{1,0:T(1,128)}', space=vmem, size = 0x9000, scoped, tag = 'internal scratch']
  #allocation2 [shape = 'f32[2,4,128]{2,1,0:T(4,128)}', space=vmem, size = 0x1000, scoped, tag = 'scratch operand']
  %s0 = inlined_call_operand.hbm [shape: f32[2,4,256], index: 0, kind: input, shape index: {}]
  %s1 = inlined_call_operand.hbm [shape: f32[4,4], index: 1, kind: input, shape index: {}]
  %s2 = inlined_call_operand.hbm [shape: f32[1,2,4], index: 2, kind: output, shape index: {}]
  %s3 = sld [smem:[#allocation0]]
  $region57: #{tpu_custom_call.1} parent=0
    _
  %s5 = ssub.s32 1, %s3
  %s6 = scalar_select 0, %s5, %s3
  $region1: #{tpu_custom_call.1} parent=0
    #allocation3 [shape = 'u8[8192]{0}', space=vmem, size = 0x2000, scoped, tag = 'input window, operand 0']
    #allocation4 [shape = 's32[2]{0}', space=sflag, size = 0x8, scoped, tag = 'scoped memory for tpu_custom_call.1']
    #allocation5 [shape = 's32[2]{0}', space=sflag, size = 0x8, scoped, tag = 'scoped memory for tpu_custom_call.1']
    #allocation6 [shape = 'u8[2048]{0}', space=vmem, size = 0x800, scoped, tag = 'input window, operand 1, single buffered']
    #allocation7 [shape = 's32[1]{0}', space=sflag, size = 0x4, scoped, tag = 'scoped memory for tpu_custom_call.1']
    #allocation8 [shape = 'u8[1024]{0}', space=vmem, size = 0x400, scoped, tag = 'output window, operand 0, single buffered']
    %7 = vsyncpa [#allocation4], 0
    %s8 = scalar_lea.sflag [#allocation4], 1
    %9 = vsyncpa %s8, 0
    %10 = vsyncpa [#allocation7], 0
    %11 = vsyncpa [#allocation5], 0
    loop: start=0, step=1, limit=4
    $region2: #{tpu_custom_call.1} parent=1 // loop_pre_header
      _
    $region3: #{tpu_custom_call.1} parent=1 // loop_header
      %s13 = sphi 0, %s17
      %p14 = scmp.ge.s32.totalorder %s13, 4
      %s20 = sphi 0, %s32
      %s21 = sphi 0, %s28
      %s22 = sphi 0, %s20
      %s23 = sphi 0, %s21
      %s24 = sphi 0, %s22
      %s25 = sphi 0, %s23
      %s37 = sphi 0, %s39
      %s40 = sphi 0, %s37
      %s41 = sphi 0, %s40
      %s57 = sphi 0, %s41
      %s61 = sphi 0, %s61
      %s63 = sphi 0, %s61
      %s64 = sphi 0, %s63
      %s78 = sphi 0, %s64
      %s84 = sphi 0, %s86
      %s87 = sphi 0, %s84
      %s88 = sphi 0, %s87
      %s104 = sphi 0, %s88
    $region4: #{tpu_custom_call.1} parent=1 // loop_header_branch
      %16 = sbr.rel (%p14) target = $region8
    $region5: #{tpu_custom_call.1} parent=1 // loop_body
      %s18 = ssub.s32 %s13, 1
      %s19 = ssub.s32 %s13, 2
      %s26 = sadd.s32 1, %s21
      %p27 = scmp.ge.s32.totalorder %s26, 2
      %s28 = scalar_select %p27, 0, %s26
      %s29 = sadd.s32 1, %s20
      %s30 = scalar_select %p27, %s29, %s20
      %p31 = scmp.ge.s32.totalorder %s30, 1
      %s32 = scalar_select %p31, 0, %s30
      %s33 = ssub.s32 %s20, %s32
      %s34 = ssub.s32 %s21, %s28
      %s35 = sor.u32 %s33, %s34
      %p36 = scmp.eq.s32.totalorder %s35, 0
      %s38 = sadd.s32 %s37, 1
      %s39 = scalar_select %p36, %s37, %s38
      %p42 = pneg %p36
      %p43 = scmp.eq.s32.totalorder %s13, 1
      %p44 = por %p42, %p43
      %p45 = scmp.ne.s32.totalorder %s37, %s40
      %p46 = scmp.eq.s32.totalorder %s13, 0
      %p47 = por %p45, %p46
      %p48 = scmp.ne.s32.totalorder %s37, %s40
      %p49 = scmp.eq.s32.totalorder %s18, 1
      %p50 = por %p48, %p49
      %p51 = scmp.ne.s32.totalorder %s40, %s41
      %p52 = scmp.eq.s32.totalorder %s18, 0
      %p53 = por %p51, %p52
      %p54 = scmp.ne.s32.totalorder %s40, %s41
      %p55 = scmp.eq.s32.totalorder %s19, 1
      %p56 = por %p54, %p55
      %p58 = scmp.ne.s32.totalorder %s41, %s57
      %p59 = scmp.eq.s32.totalorder %s19, 0
      %p60 = por %p58, %p59
      %s62 = sadd.s32 %s61, 1
      %p65 = scmp.eq.s32.totalorder %s13, 1
      %p66 = scmp.ne.s32.totalorder %s61, %s63
      %p67 = scmp.eq.s32.totalorder %s13, 0
      %p68 = por %p66, %p67
      %p69 = scmp.ne.s32.totalorder %s61, %s63
      %p70 = scmp.eq.s32.totalorder %s18, 1
      %p71 = por %p69, %p70
      %p72 = scmp.ne.s32.totalorder %s63, %s64
      %p73 = scmp.eq.s32.totalorder %s18, 0
      %p74 = por %p72, %p73
      %p75 = scmp.ne.s32.totalorder %s63, %s64
      %p76 = scmp.eq.s32.totalorder %s19, 1
      %p77 = por %p75, %p76
      %p79 = scmp.ne.s32.totalorder %s64, %s78
      %p80 = scmp.eq.s32.totalorder %s19, 0
      %p81 = por %p79, %p80
      %s82 = ssub.s32 %s20, %s32
      %p83 = scmp.eq.s32.totalorder %s82, 0
      %s85 = sadd.s32 %s84, 1
      %s86 = scalar_select %p83, %s84, %s85
      %p89 = pneg %p83
      %p90 = scmp.eq.s32.totalorder %s13, 1
      %p91 = por %p89, %p90
      %p92 = scmp.ne.s32.totalorder %s84, %s87
      %p93 = scmp.eq.s32.totalorder %s13, 0
      %p94 = por %p92, %p93
      %p95 = scmp.ne.s32.totalorder %s84, %s87
      %p96 = scmp.eq.s32.totalorder %s18, 1
      %p97 = por %p95, %p96
      %p98 = scmp.ne.s32.totalorder %s87, %s88
      %p99 = scmp.eq.s32.totalorder %s18, 0
      %p100 = por %p98, %p99
      %p101 = scmp.ne.s32.totalorder %s87, %s88
      %p102 = scmp.eq.s32.totalorder %s19, 1
      %p103 = por %p101, %p102
      %p105 = scmp.ne.s32.totalorder %s88, %s104
      %p106 = scmp.eq.s32.totalorder %s19, 0
      %p107 = por %p105, %p106
      %p108 = scmp.le.s32.totalorder 1, %s13
      %p109 = scmp.lt.s32.totalorder %s13, 3
      %p110 = pnand %p108, %p109
      %p111 = pneg %p110
      // Predicated region
      $region9: #{tpu_custom_call.1} parent=5 // pred_check
        _
      $region10: #{tpu_custom_call.1} parent=5 // pred_check_branch
        %113 = sbr.rel (%p110) target = $region12
      $region11: #{tpu_custom_call.1} parent=5 // pred_region
        %s114 = ssub.s32 %s13, 1
        // Predicated region
        $region13: #{tpu_custom_call.1} parent=11 // pred_check
          %p115 = pneg %p74
        $region14: #{tpu_custom_call.1} parent=11 // pred_check_branch
          %117 = sbr.rel (%p115) target = $region16
        $region15: #{tpu_custom_call.1} parent=11 // pred_region
          %119 = vsyncadd [#allocation7], 0
          %s121 = sshll.u32 %s1, 4
          %s122 = int_to_ptr.hbm [resolvable:$true] %s121
          %s123 = sshll.u32 [#allocation6], 4
          %s124 = int_to_ptr.vmem [resolvable:$true] %s123
          %126 = dma.hbm_to_vmem [thread:$0]  %s122, 64, %s124, [#allocation7]
        $region16: #{tpu_custom_call.1} parent=11 // pred_fallthru
          _
      $region12: #{tpu_custom_call.1} parent=5 // pred_fallthru
        _
      %p127 = scmp.lt.s32.totalorder %s13, 2
      // Predicated region
      $region17: #{tpu_custom_call.1} parent=5 // pred_check
        %p128 = pneg %p127
      $region18: #{tpu_custom_call.1} parent=5 // pred_check_branch
        %130 = sbr.rel (%p128) target = $region20
      $region19: #{tpu_custom_call.1} parent=5 // pred_region
        // Predicated region
        $region21: #{tpu_custom_call.1} parent=19 // pred_check
          %p131 = pneg %p47
        $region22: #{tpu_custom_call.1} parent=19 // pred_check_branch
          %133 = sbr.rel (%p131) target = $region24
        $region23: #{tpu_custom_call.1} parent=19 // pred_region
          %s134 = sand.u32 %s37, 1
          %s135 = scalar_lea.sflag [#allocation4], %s134
          %s136 = sand.u32 %s37, 1
          %s137 = smul.addr %s136, 8
          %s138 = scalar_lea.vmem [#allocation3], %s137
          %s139 = smul.u32 2, %s20
          %141 = vsyncadd %s135, 0
          %s142 = smul.addr %s139, 2
          %s143 = sadd.s32 %s21, %s142
          %s144 = smul.addr %s143, 4
          %s145 = scalar_lea.hbm %s0, %s144
          %s146 = sshll.u32 %s145, 4
          %s147 = int_to_ptr.hbm [resolvable:$true] %s146
          %s148 = sshll.u32 %s138, 4
          %s149 = int_to_ptr.vmem [resolvable:$true] %s148
          %154 = dma.hbm_to_vmem [thread:$0]  %s147, 128, %s149, %s135, 128, 64, 4
        $region24: #{tpu_custom_call.1} parent=19 // pred_fallthru
          _
      $region20: #{tpu_custom_call.1} parent=5 // pred_fallthru
        _
      %p155 = scmp.le.s32.totalorder 1, %s13
      %p156 = scmp.lt.s32.totalorder %s13, 3
      %p157 = pnand %p155, %p156
      %p158 = pneg %p157
      // Predicated region
      $region25: #{tpu_custom_call.1} parent=5 // pred_check
        _
      $region26: #{tpu_custom_call.1} parent=5 // pred_check_branch
        %160 = sbr.rel (%p157) target = $region28
      $region27: #{tpu_custom_call.1} parent=5 // pred_region
        %s161 = ssub.s32 %s13, 1
        %s162 = sand.u32 %s40, 1
        %s163 = scalar_lea.sflag [#allocation4], %s162
        %s164 = sand.u32 %s40, 1
        %s165 = smul.addr %s164, 8
        %s166 = scalar_lea.vmem [#allocation3], %s165
        // Predicated region
        $region29: #{tpu_custom_call.1} parent=27 // pred_check
          %p167 = pneg %p53
        $region30: #{tpu_custom_call.1} parent=27 // pred_check_branch
          %169 = sbr.rel (%p167) target = $region32
        $region31: #{tpu_custom_call.1} parent=27 // pred_region
          %171 = dma.done %s163, 128
        $region32: #{tpu_custom_call.1} parent=27 // pred_fallthru
          _
        // Predicated region
        $region33: #{tpu_custom_call.1} parent=27 // pred_check
          %p172 = pneg %p74
        $region34: #{tpu_custom_call.1} parent=27 // pred_check_branch
          %174 = sbr.rel (%p172) target = $region36
        $region35: #{tpu_custom_call.1} parent=27 // pred_region
          %176 = dma.done [#allocation7], 64
        $region36: #{tpu_custom_call.1} parent=27 // pred_fallthru
          _
        %s177 = sand.u32 %s40, 1
        %s178 = scalar_lea.sflag [#allocation4], %s177
        %s179 = sand.u32 %s40, 1
        %s180 = smul.addr %s179, 8
        %s181 = scalar_lea.vmem [#allocation3], %s180
        %p182 = pneg %p53
        %p183 = pneg %p50
        %p184 = pneg %p74
        %p185 = pneg %p71
        %p186 = pneg %p100
        %p187 = pneg %p97
        %s188 = smul.u32 2, %s22
        %p189 = scmp.eq.s32.totalorder %s23, 0
        // Predicated region
        $region37: #{tpu_custom_call.1} parent=27 // pred_check
          %p190 = pneg %p189
        $region38: #{tpu_custom_call.1} parent=27 // pred_check_branch
          %192 = sbr.rel (%p190) target = $region40
        $region39: #{tpu_custom_call.1} parent=27 // pred_region
          %193 = vst [vmem:[#allocation2] sm:$0xf] 0.0
          %194 = vst [vmem:[#allocation2 + $0x4] sm:$0xf] 0.0
        $region40: #{tpu_custom_call.1} parent=27 // pred_fallthru
          _
        %v195 = vld [vmem:[#allocation2] sm:$0xf]
        %v196 = vld [vmem:[#allocation2 + $0x4] sm:$0xf]
        %v197 = vld [vmem:[%s166] sm:$0xf]
        %v198 = vld [vmem:[%s166 + $0x4] sm:$0xf]
        %v199 = vadd.f32 %v195, %v197
        %v200 = vadd.f32 %v196, %v198
        %201 = vst [vmem:[#allocation2] sm:$0xf] %v199
        %202 = vst [vmem:[#allocation2 + $0x4] sm:$0xf] %v200
        %p203 = scmp.eq.s32.totalorder %s23, 1
        // Predicated region
        $region41: #{tpu_custom_call.1} parent=27 // pred_check
          %p204 = pneg %p203
        $region42: #{tpu_custom_call.1} parent=27 // pred_check_branch
          %206 = sbr.rel (%p204) target = $region44
        $region43: #{tpu_custom_call.1} parent=27 // pred_region
          %v207 = vld [vmem:[#allocation2] sm:$0xf]
          %v208 = vld [vmem:[#allocation2 + $0x4] sm:$0xf]
          %vm209 = vcmask 1043456
          %v210 = vsel %vm209, %v207, 0.0
          %211 = vadd.xlane.f32.xlu0 %v210
          %v212 = vpop.xlane.xlu0 %211
          %v213 = vsel %vm209, %v208, 0.0
          %214 = vadd.xlane.f32.xlu0 %v213
          %v215 = vpop.xlane.xlu0 %214
          %v216 = vmul.f32 %v212, 0.00390625
          %v217 = vmul.f32 %v215, 0.00390625
          %v218 = vld [vmem:[#allocation6] sm:$0xf]
          %v221 = vlaneseq
          %v222 = vand.u32 %v221, 127
          %v223 = vperm.slane %v216, %v222
          %v224 = vperm.slane %v217, %v222
          %vm225 = vcmask 1041409
          %v226 = vsel %vm225, %v224, %v223
          %vm227 = vcmask 31744
          %v228 = vsel %vm227, %v226, 0
          %v231 = vsel %vm209, %v218, 0
          %233 = vmatpush.msra.mxu0 0.0
          %234 = vmatpush.msra.mxu0 0.0
          %235 = vmatpush.msra.mxu0 0.0
          %236 = vmatpush.msra.mxu0 0.0
          %237 = vmatpush.msra.mxu0 0.0
          %238 = vmatpush.msra.mxu0 0.0
          %239 = vmatpush.msra.mxu0 0.0
          %240 = vmatpush.msra.mxu0 0.0
          %241 = vmatpush.msra.mxu0 0.0
          %242 = vmatpush.msra.mxu0 0.0
          %243 = vmatpush.msra.mxu0 0.0
          %244 = vmatpush.msra.mxu0 0.0
          %245 = vmatpush.msra.mxu0 0.0
          %246 = vmatpush.msra.mxu0 0.0
          %247 = vmatpush.msra.mxu0 0.0
          %248 = vmatpush.msra.mxu0 %v231
          %249 = vmatmul.f32.gmra.mxu0 %v228
          %v250 = vpop.f32.mrf.mxu0
          %v251 = vadd.f32 0.0, %v250
          %252 = vdwg.mxu0
          %vm253 = vcmask 25600
          %v254 = vsel %vm253, %v251, -inf
          %255 = vmax.xlane.f32.xlu0 %v254
          %v256 = vpop.xlane.xlu0 %255
          %vm257 = vcmp.ge.f32.partialorder %v251, %v256
          %v258 = vsel %vm257, %v222, 4
          %v259 = vsel %vm253, %v258, 2147483647
          %v260 = vand.u32 %v259, 65535
          %v261 = vshra.s32 %v259, 16
          %v262 = vcvt.s32.f32 %v260
          %v263 = vcvt.s32.f32 %v261
          %264 = vmin.xlane.f32.xlu0 %v263
          %v265 = vpop.xlane.xlu0 %264
          %vm266 = vcmp.eq.f32.partialorder %v263, %v265
          %v267 = vsel %vm266, %v262, inf
          %268 = vmin.xlane.f32.xlu0 %v267
          %v269 = vpop.xlane.xlu0 %268
          %v270 = vcvt.f32.s32 %v269
          %v271 = vcvt.f32.s32 %v265
          %v272 = vshll.u32 %v271, 16
          %v273 = vadd.s32 %v272, %v270
          %vm274 = vcmp.eq.s32.totalorder %v222, %v273
          %v275 = vsel %vm274, 1, 0
          %v276 = vcvt.s32.f32 %v275
          %277 = vst.msk [vmem:[#allocation8] sm:$0x3] %vm253, %v276
        $region44: #{tpu_custom_call.1} parent=27 // pred_fallthru
          _
        // Predicated region
        $region45: #{tpu_custom_call.1} parent=27 // pred_check
          %p278 = pneg %p97
        $region46: #{tpu_custom_call.1} parent=27 // pred_check_branch
          %280 = sbr.rel (%p278) target = $region48
        $region47: #{tpu_custom_call.1} parent=27 // pred_region
          %282 = vsyncadd [#allocation5], 0
          %s283 = smul.addr %s22, 2
          %s284 = scalar_lea.hbm %s2, %s283
          %s286 = sshll.u32 [#allocation8], 4
          %s287 = int_to_ptr.vmem [resolvable:$true] %s286
          %s288 = sshll.u32 %s284, 4
          %s289 = int_to_ptr.hbm [resolvable:$true] %s288
          %291 = dma.vmem_to_hbm [thread:$0]  %s287, 32, %s289, [#allocation5]
        $region48: #{tpu_custom_call.1} parent=27 // pred_fallthru
          _
        // Predicated region
        $region49: #{tpu_custom_call.1} parent=27 // pred_check
          %p292 = pneg %p97
        $region50: #{tpu_custom_call.1} parent=27 // pred_check_branch
          %294 = sbr.rel (%p292) target = $region52
        $region51: #{tpu_custom_call.1} parent=27 // pred_region
          %296 = dma.done [#allocation5], 32
        $region52: #{tpu_custom_call.1} parent=27 // pred_fallthru
          _
      $region28: #{tpu_custom_call.1} parent=5 // pred_fallthru
        _
      %p297 = scmp.le.s32.totalorder 2, %s13
      // Predicated region
      $region53: #{tpu_custom_call.1} parent=5 // pred_check
        %p298 = pneg %p297
      $region54: #{tpu_custom_call.1} parent=5 // pred_check_branch
        %300 = sbr.rel (%p298) target = $region56
      $region55: #{tpu_custom_call.1} parent=5 // pred_region
        %s301 = ssub.s32 %s13, 2
      $region56: #{tpu_custom_call.1} parent=5 // pred_fallthru
        _
    $region6: #{tpu_custom_call.1} parent=1 // loop_footer
      %s17 = sadd.s32 1, %s13
    $region7: #{tpu_custom_call.1} parent=1 // loop_footer_branch
      %12 = sbr.rel target = $region3
    $region8: #{tpu_custom_call.1} parent=1 // loop_exit
      _
    %302 = vsyncpa [#allocation4], 1
    %s303 = scalar_lea.sflag [#allocation4], 1
    %304 = vsyncpa %s303, 1
    %305 = vsyncpa [#allocation7], 1
    %306 = vsyncpa [#allocation5], 1
    %s307 = scalar_lea.sflag [#allocation5], 1
    %308 = vsyncpa %s307, 1

</llo_original>
